<compile_context>
chip_gen: v7x
topology: tpu7x:2x2x1
jax: 0.10.0
libtpu: 0.0.40
codegen_flags: <defaults>
</compile_context>

<pallas_src>
import math
import functools
from typing import NamedTuple

import jax
import jax.numpy as jnp
from jax import lax
from jax.experimental import pallas as pl
from jax.experimental.pallas import tpu as pltpu


_SQRT_HALF = 1.0 / math.sqrt(2.0)
_TANH_C0 = math.sqrt(2.0 / math.pi)
_TANH_C1 = 0.044715


def _round_up(v, m):
    return ((v + m - 1) // m) * m


def _cdiv(a, b):
    return (a + b - 1) // b


def _vmem_cap_bytes():
    """Per-generation scoped-VMEM ceiling, with headroom for Mosaic scratch."""
    phys = 64 << 20                      # conservative default: v7x per-TC VMEM
    try:
        info = pltpu.get_tpu_info()
        phys = int(getattr(info, "vmem_capacity_bytes", phys))
    except Exception:
        pass
    # ~80% of physical: ~51 MiB on v7x (64 MiB), ~102 MiB on v5e/v6e (128 MiB).
    return max(int(phys * 0.8), 32 << 20)


def _vmem_bytes(tm, th, din_p, dout_p, cd_sz, out_sz):
    """Estimated per-step VMEM footprint: double-buffered slabs + f32
    accumulator + the materialized fc1 intermediate and its cast copy."""
    return (
        2 * tm * din_p * cd_sz            # x tile (double-buffered)
        + 2 * tm * dout_p * out_sz        # out tile
        + 2 * din_p * th * cd_sz          # w1 column slab
        + 2 * th * dout_p * cd_sz         # w2 row slab
        + 2 * (th + dout_p) * 4           # bias slabs (f32)
        + tm * dout_p * 4                 # f32 accumulator scratch
        + tm * th * (4 + cd_sz)           # fc1 intermediate (f32 + cast copy)
    )


def _mlp_kernel(x_ref, w1_ref, b1_ref, w2_ref, b2_ref, o_ref, acc_ref, *,
                approx_gelu):
    """One (token-tile, hidden-tile) grid step of y = fc2(GELU(fc1(x)))."""
    h_idx = pl.program_id(1)

    # fc1 partial: [TM, Din] @ [Din, TH]  (MXU, f32 accumulation)
    h = jnp.dot(x_ref[...], w1_ref[...], preferred_element_type=jnp.float32)
    h = h + b1_ref[...].astype(jnp.float32)
    if approx_gelu:
        # tanh approximation: transcendental goes to the (otherwise idle) EUP.
        h = 0.5 * h * (1.0 + jnp.tanh(_TANH_C0 * (h + _TANH_C1 * h * h * h)))
    else:
        # exact (erf) GELU, matching torch.nn.GELU() default.
        h = 0.5 * h * (1.0 + lax.erf(h * _SQRT_HALF))
    # dropout with p=0.0 is the identity; nothing to do.
    h = h.astype(w2_ref.dtype)
    partial = jnp.dot(h, w2_ref[...], preferred_element_type=jnp.float32)

    @pl.when(h_idx == 0)
    def _first():
        acc_ref[...] = partial            # no zero-init store/load round trip

    @pl.when(h_idx > 0)
    def _accumulate():
        acc_ref[...] += partial

    @pl.when(h_idx == pl.num_programs(1) - 1)
    def _finalize():
        o_ref[...] = (acc_ref[...] + b2_ref[...].astype(jnp.float32)
                      ).astype(o_ref.dtype)


class MlpParams(NamedTuple):
    """Pre-padded, pre-cast weights (done ONCE, hoisted out of the call path)."""
    w1p: jax.Array   # (din_p, hid_p)  compute dtype
    b1p: jax.Array   # (1, hid_p)      f32
    w2p: jax.Array   # (hid_p, dout_p) compute dtype
    b2p: jax.Array   # (1, dout_p)     f32
    d_in: int
    hidden: int
    d_out: int
    th: int          # hidden tile (multiple of 128), chosen at prepare time


def prepare_mlp_params(w1, b1, w2, b2, *, compute_dtype=jnp.bfloat16,
                       block_hidden=512, block_tokens=512):
    """Pad feature dims to multiples of 128 and cast to compute dtype ONCE."""
    d_in, hidden = w1.shape
    hidden2, d_out = w2.shape
    assert hidden == hidden2 and b1.shape == (hidden,) and b2.shape == (d_out,)

    cd = jnp.dtype(compute_dtype)
    cd_sz = cd.itemsize

    din_p = _round_up(d_in, 128)
    dout_p = _round_up(d_out, 128)
    hid_128 = _round_up(hidden, 128)

    # Balanced hidden tile near block_hidden (multiple of 128), shrunk until
    # the per-step footprint fits the generation's VMEM ceiling.
    n_h = max(1, _cdiv(hid_128, max(block_hidden, 128)))
    th = min(_round_up(_cdiv(hid_128, n_h), 128), hid_128)
    cap = _vmem_cap_bytes()
    tm_ref = _round_up(block_tokens, 16)
    while th > 128 and _vmem_bytes(tm_ref, th, din_p, dout_p, cd_sz, 4) > cap:
        th -= 128
    hid_p = _round_up(hid_128, th)

    # Zero padding is mathematically exact: padded Din cols / hidden cols /
    # Dout cols contribute nothing and extra Dout cols are sliced off.
    w1p = jnp.pad(w1, ((0, din_p - d_in), (0, hid_p - hidden))).astype(cd)
    w2p = jnp.pad(w2, ((0, hid_p - hidden), (0, dout_p - d_out))).astype(cd)
    b1p = jnp.pad(b1, (0, hid_p - hidden)).reshape(1, hid_p).astype(jnp.float32)
    b2p = jnp.pad(b2, (0, dout_p - d_out)).reshape(1, dout_p).astype(jnp.float32)

    return MlpParams(w1p, b1p, w2p, b2p,
                     int(d_in), int(hidden), int(d_out), int(th))


@functools.partial(
    jax.jit,
    static_argnames=("tm", "th", "d_out", "out_dtype", "approx_gelu"))
def _mlp_call(x2d, w1p, b1p, w2p, b2p, *, tm, th, d_out, out_dtype, approx_gelu):
    tokens, d_in = x2d.shape
    din_p, hid_p = w1p.shape
    dout_p = w2p.shape[1]
    cd = w1p.dtype
    cd_sz = jnp.dtype(cd).itemsize
    out_sz = jnp.dtype(out_dtype).itemsize

    tokens_p = _round_up(tokens, tm)
    # Only the activations are padded/cast per call; weights arrive prepared.
    xp = jnp.pad(x2d, ((0, tokens_p - tokens), (0, din_p - d_in))).astype(cd)

    grid = (tokens_p // tm, hid_p // th)

    need = _vmem_bytes(tm, th, din_p, dout_p, cd_sz, out_sz)
    vmem_limit = int(max(min(need + (4 << 20), _vmem_cap_bytes()), 16 << 20))

    n_token_tiles = grid[0]
    cost = pl.CostEstimate(
        flops=2 * tokens_p * din_p * hid_p + 2 * tokens_p * hid_p * dout_p,
        transcendentals=tokens_p * hid_p,
        bytes_accessed=int(
            xp.size * cd_sz
            # W1/W2/biases are re-streamed once per token tile.
            + n_token_tiles * (w1p.size * cd_sz + w2p.size * cd_sz
                               + b1p.size * 4 + b2p.size * 4)
            + tokens_p * dout_p * out_sz),
    )

    kernel = functools.partial(_mlp_kernel, approx_gelu=approx_gelu)

    out2d = pl.pallas_call(
        kernel,
        out_shape=jax.ShapeDtypeStruct((tokens_p, dout_p), out_dtype),
        grid_spec=pltpu.PrefetchScalarGridSpec(
            num_scalar_prefetch=0,
            grid=grid,
            in_specs=[
                pl.BlockSpec((tm, din_p), lambda i, h: (i, 0)),     # x tile
                pl.BlockSpec((din_p, th), lambda i, h: (0, h)),     # w1 col slab
                pl.BlockSpec((1, th), lambda i, h: (0, h)),         # b1 slab
                pl.BlockSpec((th, dout_p), lambda i, h: (h, 0)),    # w2 row slab
                pl.BlockSpec((1, dout_p), lambda i, h: (0, 0)),     # b2
            ],
            out_specs=pl.BlockSpec((tm, dout_p), lambda i, h: (i, 0)),
            scratch_shapes=[pltpu.VMEM((tm, dout_p), jnp.float32)],
        ),
        compiler_params=pltpu.CompilerParams(
            dimension_semantics=("parallel", "arbitrary"),
            vmem_limit_bytes=vmem_limit,
        ),
        cost_estimate=cost,
    )(xp, w1p, b1p, w2p, b2p)

    return out2d[:tokens, :d_out]


def mlp_pallas(x, params: MlpParams, *, block_tokens=512, approx_gelu=False):
    """x: (..., Din) -> (..., Dout) using the fused Pallas MLP kernel."""
    *lead, d_in = x.shape
    assert d_in == params.d_in, "x feature dim inconsistent with prepared weights"
    x2d = x.reshape(-1, d_in)
    tokens = x2d.shape[0]

    cd_sz = jnp.dtype(params.w1p.dtype).itemsize
    out_dtype = jnp.dtype(x.dtype)
    out_sz = out_dtype.itemsize
    sub = 16 if cd_sz <= 2 else 8

    # Balanced token tile: near-equal tiles close to block_tokens with minimal
    # padding (weight HBM traffic scales as ceil(T/tm) * (|W1|+|W2|)).
    n_t = max(1, _cdiv(tokens, max(block_tokens, sub)))
    tm = _round_up(_cdiv(tokens, n_t), sub)
    tm = min(tm, _round_up(tokens, sub))

    # Shrink tm if the per-step footprint exceeds the generation's VMEM ceiling.
    din_p, hid_p = params.w1p.shape
    dout_p = params.w2p.shape[1]
    cap = _vmem_cap_bytes()
    while tm > sub and _vmem_bytes(tm, params.th, din_p, dout_p,
                                   cd_sz, out_sz) > cap:
        tm = _round_up(max(tm // 2, sub), sub)

    out2d = _mlp_call(x2d, params.w1p, params.b1p, params.w2p, params.b2p,
                      tm=int(tm), th=int(params.th), d_out=int(params.d_out),
                      out_dtype=out_dtype, approx_gelu=bool(approx_gelu))
    return out2d.reshape(*lead, params.d_out)


def _reference_mlp(x, w1, b1, w2, b2):
    h = x @ w1 + b1
    h = 0.5 * h * (1.0 + lax.erf(h / math.sqrt(2.0)))
    return h @ w2 + b2


if __name__ == "__main__":
    # Small shapes consistent with the module: tokens = batch * seq.
    batch, seq = 2, 8
    in_features, hidden_features, out_features = 32, 256, 32

    key = jax.random.PRNGKey(0)
    kx, kw1, kb1, kw2, kb2 = jax.random.split(key, 5)

    x = jax.random.normal(kx, (batch, seq, in_features), dtype=jnp.float32)

    # Deterministic parameter init (shapes match nn.Linear; values synthetic).
    bound1 = 1.0 / math.sqrt(in_features)
    w1 = jax.random.uniform(kw1, (in_features, hidden_features),
                            minval=-bound1, maxval=bound1, dtype=jnp.float32)
    b1 = jax.random.uniform(kb1, (hidden_features,),
                            minval=-bound1, maxval=bound1, dtype=jnp.float32)
    bound2 = 1.0 / math.sqrt(hidden_features)
    w2 = jax.random.uniform(kw2, (hidden_features, out_features),
                            minval=-bound2, maxval=bound2, dtype=jnp.float32)
    b2 = jax.random.uniform(kb2, (out_features,),
                            minval=-bound2, maxval=bound2, dtype=jnp.float32)

    y_ref = _reference_mlp(x, w1, b1, w2, b2)

    # 1) f32 compute path, single tile: exact comparison vs reference.
    p_f32 = prepare_mlp_params(w1, b1, w2, b2, compute_dtype=jnp.float32)
    y = jax.block_until_ready(mlp_pallas(x, p_f32))
    assert y.shape == (batch, seq, out_features)
    assert jnp.allclose(y, y_ref, atol=1e-5, rtol=1e-5)

    # 2) multi-tile grid (2 token tiles x 2 hidden tiles) to exercise the
    #    hidden-axis reduction / accumulator path (small tiles for test only).
    p_small = prepare_mlp_params(w1, b1, w2, b2, compute_dtype=jnp.float32,
                                 block_hidden=128)
    y_tiled = jax.block_until_ready(mlp_pallas(x, p_small, block_tokens=8))
    assert jnp.allclose(y_tiled, y_ref, atol=1e-5, rtol=1e-5)

    # 3) default bf16 compute path (MXU-peak dtype, f32 accumulation); weights
    #    were padded + cast exactly once in prepare_mlp_params.
    p_bf16 = prepare_mlp_params(w1, b1, w2, b2)
    y_bf16 = jax.block_until_ready(mlp_pallas(x, p_bf16))
    assert jnp.allclose(y_bf16, y_ref, atol=5e-2, rtol=5e-2)
    # Second call reuses prepared weights and the jit cache (hoisted pad/cast).
    y_bf16_2 = jax.block_until_ready(mlp_pallas(x, p_bf16))
    assert jnp.allclose(y_bf16_2, y_bf16)

    # 4) optional tanh-approx GELU path (EUP transcendental).
    y_approx = jax.block_until_ready(mlp_pallas(x, p_f32, approx_gelu=True))
    assert jnp.allclose(y_approx, y_ref, atol=2e-2, rtol=2e-2)

    print("KERNEL_OK")
</pallas_src>

<mosaic_0001>
module attributes {stable_mosaic.version = 11 : i64} {
  func.func @_mlp_kernel(%arg0: i32, %arg1: i32, %arg2: memref<16x128xf32, #tpu.memory_space<vmem>>, %arg3: memref<128x256xf32, #tpu.memory_space<vmem>>, %arg4: memref<1x256xf32, #tpu.memory_space<vmem>>, %arg5: memref<256x128xf32, #tpu.memory_space<vmem>>, %arg6: memref<1x128xf32, #tpu.memory_space<vmem>>, %arg7: memref<16x128xf32, #tpu.memory_space<vmem>>, %arg8: memref<16x128xf32, #tpu.memory_space<vmem>>) attributes {dimension_semantics = [#tpu.dimension_semantics<parallel>, #tpu.dimension_semantics<arbitrary>], iteration_bounds = array<i64: 1, 1>, scalar_prefetch = 0 : i64, scratch_operands = 1 : i64, tpu.core_type = #tpu.core_type<tc>, window_params = [{transform_indices = @transform_0, window_bounds = array<i64: 16, 128>}, {transform_indices = @transform_1, window_bounds = array<i64: 128, 256>}, {transform_indices = @transform_2, window_bounds = array<i64: 1, 256>}, {transform_indices = @transform_3, window_bounds = array<i64: 256, 128>}, {pipeline_mode = #tpu.pipeline_mode<synchronous>, transform_indices = @transform_4, window_bounds = array<i64: 1, 128>}, {transform_indices = @transform_5, window_bounds = array<i64: 16, 128>}]} {
    %c0 = arith.constant 0 : index
    %c0_0 = arith.constant 0 : index
    %0 = vector.load %arg2[%c0, %c0_0] : memref<16x128xf32, #tpu.memory_space<vmem>>, vector<16x128xf32>
    %c0_1 = arith.constant 0 : index
    %c0_2 = arith.constant 0 : index
    %1 = vector.load %arg3[%c0_1, %c0_2] : memref<128x256xf32, #tpu.memory_space<vmem>>, vector<128x256xf32>
    %cst = arith.constant dense<0.000000e+00> : vector<16x256xf32>
    %2 = tpu.matmul %0, %1, %cst {dimension_numbers = #tpu.dot_dimension_numbers<[1], [0], [0], [1], [0, 0, 1, 1], [], []>} : vector<16x128xf32>, vector<128x256xf32>, vector<16x256xf32> -> vector<16x256xf32>
    %c0_3 = arith.constant 0 : index
    %c0_4 = arith.constant 0 : index
    %3 = vector.load %arg4[%c0_3, %c0_4] : memref<1x256xf32, #tpu.memory_space<vmem>>, vector<1x256xf32>
    %4 = vector.broadcast %3 : vector<1x256xf32> to vector<16x256xf32>
    %5 = arith.addf %2, %4 : vector<16x256xf32>
    %cst_5 = arith.constant 5.000000e-01 : f32
    %6 = vector.broadcast %cst_5 : f32 to vector<16x256xf32>
    %7 = arith.mulf %6, %5 : vector<16x256xf32>
    %cst_6 = arith.constant 0.707106769 : f32
    %8 = vector.broadcast %cst_6 : f32 to vector<16x256xf32>
    %9 = arith.mulf %5, %8 : vector<16x256xf32>
    %10 = math.erf %9 : vector<16x256xf32>
    %cst_7 = arith.constant 1.000000e+00 : f32
    %11 = vector.broadcast %cst_7 : f32 to vector<16x256xf32>
    %12 = arith.addf %11, %10 : vector<16x256xf32>
    %13 = arith.mulf %7, %12 : vector<16x256xf32>
    %c0_8 = arith.constant 0 : index
    %c0_9 = arith.constant 0 : index
    %14 = vector.load %arg5[%c0_8, %c0_9] : memref<256x128xf32, #tpu.memory_space<vmem>>, vector<256x128xf32>
    %cst_10 = arith.constant dense<0.000000e+00> : vector<16x128xf32>
    %15 = tpu.matmul %13, %14, %cst_10 {dimension_numbers = #tpu.dot_dimension_numbers<[1], [0], [0], [1], [0, 0, 1, 1], [], []>} : vector<16x256xf32>, vector<256x128xf32>, vector<16x128xf32> -> vector<16x128xf32>
    %c0_i32 = arith.constant 0 : i32
    %16 = arith.cmpi eq, %arg1, %c0_i32 : i32
    %17 = arith.extui %16 : i1 to i32
    %c0_i32_11 = arith.constant 0 : i32
    %18 = arith.cmpi ne, %17, %c0_i32_11 : i32
    scf.if %18 {
      %c0_16 = arith.constant 0 : index
      %c0_17 = arith.constant 0 : index
      %25 = vector.load %arg8[%c0_16, %c0_17] : memref<16x128xf32, #tpu.memory_space<vmem>>, vector<16x128xf32>
      tpu.vector_store %arg8[%c0_16, %c0_17], %15 {strides = array<i32>} : memref<16x128xf32, #tpu.memory_space<vmem>>, vector<16x128xf32>,
    } else {
    }
    %c0_i32_12 = arith.constant 0 : i32
    %19 = arith.cmpi sgt, %arg1, %c0_i32_12 : i32
    %20 = arith.extui %19 : i1 to i32
    %c0_i32_13 = arith.constant 0 : i32
    %21 = arith.cmpi ne, %20, %c0_i32_13 : i32
    scf.if %21 {
      %c0_16 = arith.constant 0 : index
      %c0_17 = arith.constant 0 : index
      %25 = vector.load %arg8[%c0_16, %c0_17] : memref<16x128xf32, #tpu.memory_space<vmem>>, vector<16x128xf32>
      %26 = arith.addf %25, %15 : vector<16x128xf32>
      %c0_18 = arith.constant 0 : index
      %c0_19 = arith.constant 0 : index
      %27 = vector.load %arg8[%c0_18, %c0_19] : memref<16x128xf32, #tpu.memory_space<vmem>>, vector<16x128xf32>
      tpu.vector_store %arg8[%c0_18, %c0_19], %26 {strides = array<i32>} : memref<16x128xf32, #tpu.memory_space<vmem>>, vector<16x128xf32>,
    } else {
    }
    %c0_i32_14 = arith.constant 0 : i32
    %22 = arith.cmpi eq, %arg1, %c0_i32_14 : i32
    %23 = arith.extui %22 : i1 to i32
    %c0_i32_15 = arith.constant 0 : i32
    %24 = arith.cmpi ne, %23, %c0_i32_15 : i32
    scf.if %24 {
      %c0_16 = arith.constant 0 : index
      %c0_17 = arith.constant 0 : index
      %25 = vector.load %arg8[%c0_16, %c0_17] : memref<16x128xf32, #tpu.memory_space<vmem>>, vector<16x128xf32>
      %c0_18 = arith.constant 0 : index
      %c0_19 = arith.constant 0 : index
      %26 = vector.load %arg6[%c0_18, %c0_19] : memref<1x128xf32, #tpu.memory_space<vmem>>, vector<1x128xf32>
      %27 = vector.broadcast %26 : vector<1x128xf32> to vector<16x128xf32>
      %28 = arith.addf %25, %27 : vector<16x128xf32>
      %c0_20 = arith.constant 0 : index
      %c0_21 = arith.constant 0 : index
      %29 = vector.load %arg7[%c0_20, %c0_21] : memref<16x128xf32, #tpu.memory_space<vmem>>, vector<16x128xf32>
      tpu.vector_store %arg7[%c0_20, %c0_21], %28 {strides = array<i32>} : memref<16x128xf32, #tpu.memory_space<vmem>>, vector<16x128xf32>,
    } else {
    }
    return
  }
  func.func @transform_0(%arg0: i32, %arg1: i32) -> (i32, i32) {
    %c0_i32 = arith.constant 0 : i32
    %c0_i32_0 = arith.constant 0 : i32
    return %arg0, %c0_i32 : i32, i32
  }
  func.func @transform_1(%arg0: i32, %arg1: i32) -> (i32, i32) {
    %c0_i32 = arith.constant 0 : i32
    %c0_i32_0 = arith.constant 0 : i32
    return %c0_i32, %arg1 : i32, i32
  }
  func.func @transform_2(%arg0: i32, %arg1: i32) -> (i32, i32) {
    %c0_i32 = arith.constant 0 : i32
    %c0_i32_0 = arith.constant 0 : i32
    return %c0_i32, %arg1 : i32, i32
  }
  func.func @transform_3(%arg0: i32, %arg1: i32) -> (i32, i32) {
    %c0_i32 = arith.constant 0 : i32
    %c0_i32_0 = arith.constant 0 : i32
    return %arg1, %c0_i32 : i32, i32
  }
  func.func @transform_4(%arg0: i32, %arg1: i32) -> (i32, i32) {
    %c0_i32 = arith.constant 0 : i32
    %c0_i32_0 = arith.constant 0 : i32
    %c0_i32_1 = arith.constant 0 : i32
    return %c0_i32, %c0_i32_0 : i32, i32
  }
  func.func @transform_5(%arg0: i32, %arg1: i32) -> (i32, i32) {
    %c0_i32 = arith.constant 0 : i32
    %c0_i32_0 = arith.constant 0 : i32
    return %arg0, %c0_i32 : i32, i32
  }
}

</mosaic_0001>

<llo_original>
// kernel: _mlp_call.1
$region0: #{_mlp_call.1}
  #allocation0 [shape = 'u32[]', space=smem, size = 0x4, offset = 0x4, fixed_abs, tag = 'smem constant byte address 0x4 - core index']
  #allocation1 [shape = 'u32[144,128]{1,0:T(1,128)}', space=vmem, size = 0x12000, scoped, tag = 'internal scratch']
  #allocation2 [shape = 'f32[16,128]{1,0:T(8,128)}', space=vmem, size = 0x2000, scoped, tag = 'scratch operand']
  %s0 = inlined_call_operand.vmem [shape: f32[16,128], index: 0, kind: input, shape index: {}]
  %s1 = inlined_call_operand.hbm [shape: f32[128,256], index: 1, kind: input, shape index: {}]
  %s2 = inlined_call_operand.vmem [shape: f32[1,256], index: 2, kind: input, shape index: {}]
  %s3 = inlined_call_operand.hbm [shape: f32[256,128], index: 3, kind: input, shape index: {}]
  %s4 = inlined_call_operand.vmem [shape: f32[1,128], index: 4, kind: input, shape index: {}]
  %s5 = inlined_call_operand.hbm [shape: f32[16,128], index: 5, kind: output, shape index: {}]
  %s6 = sld [smem:[#allocation0]]
  $region50: #{_mlp_call.1} parent=0
    _
  %s8 = ssub.s32 1, %s6
  %s9 = scalar_select 0, %s8, %s6
  $region1: #{_mlp_call.1} parent=0
    #allocation3 [shape = 'u8[131072]{0}', space=vmem, size = 0x20000, scoped, tag = 'input window, operand 1, single buffered']
    #allocation4 [shape = 's32[1]{0}', space=sflag, size = 0x4, scoped, tag = 'scoped memory for _mlp_call.1']
    #allocation5 [shape = 's32[1]{0}', space=sflag, size = 0x4, scoped, tag = 'scoped memory for _mlp_call.1']
    #allocation6 [shape = 'u8[131072]{0}', space=vmem, size = 0x20000, scoped, tag = 'input window, operand 3, single buffered']
    #allocation7 [shape = 's32[1]{0}', space=sflag, size = 0x4, scoped, tag = 'scoped memory for _mlp_call.1']
    #allocation8 [shape = 'u8[8192]{0}', space=vmem, size = 0x2000, scoped, tag = 'output window, operand 0, single buffered']
    %10 = vsyncpa [#allocation4], 0
    %11 = vsyncpa [#allocation7], 0
    %12 = vsyncpa [#allocation5], 0
    // Predicated region
    $region2: #{_mlp_call.1} parent=1 // pred_check
      _
    $region3: #{_mlp_call.1} parent=1 // pred_check_branch
      %14 = sbr.rel (0) target = $region5
    $region4: #{_mlp_call.1} parent=1 // pred_region
      _
    $region5: #{_mlp_call.1} parent=1 // pred_fallthru
      _
    // Predicated region
    $region6: #{_mlp_call.1} parent=1 // pred_check
      _
    $region7: #{_mlp_call.1} parent=1 // pred_check_branch
      %16 = sbr.rel (0) target = $region9
    $region8: #{_mlp_call.1} parent=1 // pred_region
      %s18 = ssub.s32 4096, 4096
      %19 = vsyncadd [#allocation4], %s18
      %s20 = sshll.u32 [#allocation3], 4
      %s21 = int_to_ptr.vmem [resolvable:$true] %s20
      %26 = dma.hbm_to_vmem [thread:$0]  %s1, 4096, %s21, [#allocation4], 256, 256, 16
    $region9: #{_mlp_call.1} parent=1 // pred_fallthru
      _
    // Predicated region
    $region10: #{_mlp_call.1} parent=1 // pred_check
      _
    $region11: #{_mlp_call.1} parent=1 // pred_check_branch
      %28 = sbr.rel (0) target = $region13
    $region12: #{_mlp_call.1} parent=1 // pred_region
      _
    $region13: #{_mlp_call.1} parent=1 // pred_fallthru
      _
    // Predicated region
    $region14: #{_mlp_call.1} parent=1 // pred_check
      _
    $region15: #{_mlp_call.1} parent=1 // pred_check_branch
      %30 = sbr.rel (0) target = $region17
    $region16: #{_mlp_call.1} parent=1 // pred_region
      %s32 = ssub.s32 4096, 4096
      %33 = vsyncadd [#allocation7], %s32
      %s34 = sshll.u32 [#allocation6], 4
      %s35 = int_to_ptr.vmem [resolvable:$true] %s34
      %40 = dma.hbm_to_vmem [thread:$0]  %s3, 4096, %s35, [#allocation7], 128, 128, 8
    $region17: #{_mlp_call.1} parent=1 // pred_fallthru
      _
    // Predicated region
    $region18: #{_mlp_call.1} parent=1 // pred_check
      _
    $region19: #{_mlp_call.1} parent=1 // pred_check_branch
      %42 = sbr.rel (0) target = $region21
    $region20: #{_mlp_call.1} parent=1 // pred_region
      _
    $region21: #{_mlp_call.1} parent=1 // pred_fallthru
      _
    // Predicated region
    $region22: #{_mlp_call.1} parent=1 // pred_check
      _
    $region23: #{_mlp_call.1} parent=1 // pred_check_branch
      %44 = sbr.rel (0) target = $region25
    $region24: #{_mlp_call.1} parent=1 // pred_region
      %45 = dma.done [#allocation4], 4096
    $region25: #{_mlp_call.1} parent=1 // pred_fallthru
      _
    // Predicated region
    $region26: #{_mlp_call.1} parent=1 // pred_check
      _
    $region27: #{_mlp_call.1} parent=1 // pred_check_branch
      %47 = sbr.rel (0) target = $region29
    $region28: #{_mlp_call.1} parent=1 // pred_region
      %48 = dma.done [#allocation7], 4096
    $region29: #{_mlp_call.1} parent=1 // pred_fallthru
      _
    %v49 = vld [vmem:[%s0] sm:$0xff]
    %v50 = vld [vmem:[%s0 + $0x8] sm:$0xff]
    %v51 = vld [vmem:[#allocation3] sm:$0xff]
    %v52 = vld [vmem:[#allocation3 + $0x8] sm:$0xff]
    %v53 = vld [vmem:[#allocation3 + $0x10] sm:$0xff]
    %v54 = vld [vmem:[#allocation3 + $0x18] sm:$0xff]
    %v55 = vld [vmem:[#allocation3 + $0x20] sm:$0xff]
    %v56 = vld [vmem:[#allocation3 + $0x28] sm:$0xff]
    %v57 = vld [vmem:[#allocation3 + $0x30] sm:$0xff]
    %v58 = vld [vmem:[#allocation3 + $0x38] sm:$0xff]
    %v59 = vld [vmem:[#allocation3 + $0x40] sm:$0xff]
    %v60 = vld [vmem:[#allocation3 + $0x48] sm:$0xff]
    %v61 = vld [vmem:[#allocation3 + $0x50] sm:$0xff]
    %v62 = vld [vmem:[#allocation3 + $0x58] sm:$0xff]
    %v63 = vld [vmem:[#allocation3 + $0x60] sm:$0xff]
    %v64 = vld [vmem:[#allocation3 + $0x68] sm:$0xff]
    %v65 = vld [vmem:[#allocation3 + $0x70] sm:$0xff]
    %v66 = vld [vmem:[#allocation3 + $0x78] sm:$0xff]
    %v67 = vld [vmem:[#allocation3 + $0x80] sm:$0xff]
    %v68 = vld [vmem:[#allocation3 + $0x88] sm:$0xff]
    %v69 = vld [vmem:[#allocation3 + $0x90] sm:$0xff]
    %v70 = vld [vmem:[#allocation3 + $0x98] sm:$0xff]
    %v71 = vld [vmem:[#allocation3 + $0xa0] sm:$0xff]
    %v72 = vld [vmem:[#allocation3 + $0xa8] sm:$0xff]
    %v73 = vld [vmem:[#allocation3 + $0xb0] sm:$0xff]
    %v74 = vld [vmem:[#allocation3 + $0xb8] sm:$0xff]
    %v75 = vld [vmem:[#allocation3 + $0xc0] sm:$0xff]
    %v76 = vld [vmem:[#allocation3 + $0xc8] sm:$0xff]
    %v77 = vld [vmem:[#allocation3 + $0xd0] sm:$0xff]
    %v78 = vld [vmem:[#allocation3 + $0xd8] sm:$0xff]
    %v79 = vld [vmem:[#allocation3 + $0xe0] sm:$0xff]
    %v80 = vld [vmem:[#allocation3 + $0xe8] sm:$0xff]
    %v81 = vld [vmem:[#allocation3 + $0xf0] sm:$0xff]
    %v82 = vld [vmem:[#allocation3 + $0xf8] sm:$0xff]
    %v83 = vld [vmem:[%s2] sm:$0x3]
    %v85 = vlaneseq
    %v86 = vshrl.u32 %v85, 7
    %v87 = vsub.s32 0, %v86
    %v88 = vrot.slane %v83, %v87
    %v89 = vlaneseq
    %v90 = vshrl.u32 %v89, 7
    %v91 = vsub.s32 1, %v90
    %v92 = vrot.slane %v83, %v91
    %95 = vmatprep.subr.mxu0 %v52
    %96 = vmatpush1.msra.mxu0 %v51
    %97 = vmatprep.subr.mxu0 %v54
    %98 = vmatpush1.msra.mxu0 %v53
    %99 = vmatprep.subr.mxu0 %v56
    %100 = vmatpush1.msra.mxu0 %v55
    %101 = vmatprep.subr.mxu0 %v58
    %102 = vmatpush1.msra.mxu0 %v57
    %103 = vmatprep.subr.mxu0 %v60
    %104 = vmatpush1.msra.mxu0 %v59
    %105 = vmatprep.subr.mxu0 %v62
    %106 = vmatpush1.msra.mxu0 %v61
    %107 = vmatprep.subr.mxu0 %v64
    %108 = vmatpush1.msra.mxu0 %v63
    %109 = vmatprep.subr.mxu0 %v66
    %110 = vmatpush1.msra.mxu0 %v65
    %111 = vmatprep.subr.mxu0 %v68
    %112 = vmatpush1.msra.mxu0 %v67
    %113 = vmatprep.subr.mxu0 %v70
    %114 = vmatpush1.msra.mxu0 %v69
    %115 = vmatprep.subr.mxu0 %v72
    %116 = vmatpush1.msra.mxu0 %v71
    %117 = vmatprep.subr.mxu0 %v74
    %118 = vmatpush1.msra.mxu0 %v73
    %119 = vmatprep.subr.mxu0 %v76
    %120 = vmatpush1.msra.mxu0 %v75
    %121 = vmatprep.subr.mxu0 %v78
    %122 = vmatpush1.msra.mxu0 %v77
    %123 = vmatprep.subr.mxu0 %v80
    %124 = vmatpush1.msra.mxu0 %v79
    %125 = vmatprep.subr.mxu0 %v82
    %126 = vmatpush1.msra.mxu0 %v81
    %127 = vmatprep.subr.mxu0 0.0
    %128 = vmatpush1.msra.mxu0 0.0
    %129 = vmatprep.subr.mxu0 0.0
    %130 = vmatpush1.msra.mxu0 0.0
    %131 = vmatprep.subr.mxu0 0.0
    %132 = vmatpush1.msra.mxu0 0.0
    %133 = vmatprep.subr.mxu0 0.0
    %134 = vmatpush1.msra.mxu0 0.0
    %135 = vmatprep.subr.mxu0 0.0
    %136 = vmatpush1.msra.mxu0 0.0
    %137 = vmatprep.subr.mxu0 0.0
    %138 = vmatpush1.msra.mxu0 0.0
    %139 = vmatprep.subr.mxu0 0.0
    %140 = vmatpush1.msra.mxu0 0.0
    %141 = vmatprep.subr.mxu0 0.0
    %142 = vmatpush1.msra.mxu0 0.0
    %143 = vmatprep.subr.mxu0 0.0
    %144 = vmatpush1.msra.mxu0 0.0
    %145 = vmatprep.subr.mxu0 0.0
    %146 = vmatpush1.msra.mxu0 0.0
    %147 = vmatprep.subr.mxu0 0.0
    %148 = vmatpush1.msra.mxu0 0.0
    %149 = vmatprep.subr.mxu0 0.0
    %150 = vmatpush1.msra.mxu0 0.0
    %151 = vmatprep.subr.mxu0 0.0
    %152 = vmatpush1.msra.mxu0 0.0
    %153 = vmatprep.subr.mxu0 0.0
    %154 = vmatpush1.msra.mxu0 0.0
    %155 = vmatprep.subr.mxu0 0.0
    %156 = vmatpush1.msra.mxu0 0.0
    %157 = vmatprep.subr.mxu0 0.0
    %158 = vmatpush1.msra.mxu0 0.0
    %159 = vmatprep.mubr.f32.mxu0 0.0
    %160 = vmatmul.mubr.f32.gmra.mrb[0].mxu0 %v49
    %v161 = vpop.f32.mrb[0].mxu0
    %v162 = vadd.f32 %v88, %v161
    %v163 = vpop.f32.mrb[0].mxu0
    %v164 = vadd.f32 %v92, %v163
    %165 = vmatprep.mubr.f32.mxu0 0.0
    %166 = vmatmul.mubr.f32.gmra.mrb[0].mxu0 %v50
    %v167 = vpop.f32.mrb[0].mxu0
    %v168 = vadd.f32 %v88, %v167
    %v169 = vpop.f32.mrb[0].mxu0
    %v170 = vadd.f32 %v92, %v169
    %171 = vdwg.mxu0
    %v172 = vmul.f32 %v162, 0.5
    %v173 = vmul.f32 %v164, 0.5
    %v174 = vmul.f32 %v168, 0.5
    %v175 = vmul.f32 %v170, 0.5
    %v176 = vmul.f32 %v162, 0.70710677
    %v177 = vmul.f32 %v164, 0.70710677
    %v178 = vmul.f32 %v168, 0.70710677
    %v179 = vmul.f32 %v170, 0.70710677
    %v180 = verf.f32.pop %v176
    %v181 = verf.f32.pop %v177
    %v182 = verf.f32.pop %v178
    %v183 = verf.f32.pop %v179
    %v184 = vadd.f32 %v180, 1.0
    %v185 = vadd.f32 %v181, 1.0
    %v186 = vadd.f32 %v182, 1.0
    %v187 = vadd.f32 %v183, 1.0
    %v188 = vmul.f32 %v172, %v184
    %v189 = vmul.f32 %v173, %v185
    %v190 = vmul.f32 %v174, %v186
    %v191 = vmul.f32 %v175, %v187
    %v192 = vld [vmem:[#allocation6] sm:$0xff]
    %v193 = vld [vmem:[#allocation6 + $0x8] sm:$0xff]
    %v194 = vld [vmem:[#allocation6 + $0x10] sm:$0xff]
    %v195 = vld [vmem:[#allocation6 + $0x18] sm:$0xff]
    %v196 = vld [vmem:[#allocation6 + $0x20] sm:$0xff]
    %v197 = vld [vmem:[#allocation6 + $0x28] sm:$0xff]
    %v198 = vld [vmem:[#allocation6 + $0x30] sm:$0xff]
    %v199 = vld [vmem:[#allocation6 + $0x38] sm:$0xff]
    %v200 = vld [vmem:[#allocation6 + $0x40] sm:$0xff]
    %v201 = vld [vmem:[#allocation6 + $0x48] sm:$0xff]
    %v202 = vld [vmem:[#allocation6 + $0x50] sm:$0xff]
    %v203 = vld [vmem:[#allocation6 + $0x58] sm:$0xff]
    %v204 = vld [vmem:[#allocation6 + $0x60] sm:$0xff]
    %v205 = vld [vmem:[#allocation6 + $0x68] sm:$0xff]
    %v206 = vld [vmem:[#allocation6 + $0x70] sm:$0xff]
    %v207 = vld [vmem:[#allocation6 + $0x78] sm:$0xff]
    %v208 = vld [vmem:[#allocation6 + $0x80] sm:$0xff]
    %v209 = vld [vmem:[#allocation6 + $0x88] sm:$0xff]
    %v210 = vld [vmem:[#allocation6 + $0x90] sm:$0xff]
    %v211 = vld [vmem:[#allocation6 + $0x98] sm:$0xff]
    %v212 = vld [vmem:[#allocation6 + $0xa0] sm:$0xff]
    %v213 = vld [vmem:[#allocation6 + $0xa8] sm:$0xff]
    %v214 = vld [vmem:[#allocation6 + $0xb0] sm:$0xff]
    %v215 = vld [vmem:[#allocation6 + $0xb8] sm:$0xff]
    %v216 = vld [vmem:[#allocation6 + $0xc0] sm:$0xff]
    %v217 = vld [vmem:[#allocation6 + $0xc8] sm:$0xff]
    %v218 = vld [vmem:[#allocation6 + $0xd0] sm:$0xff]
    %v219 = vld [vmem:[#allocation6 + $0xd8] sm:$0xff]
    %v220 = vld [vmem:[#allocation6 + $0xe0] sm:$0xff]
    %v221 = vld [vmem:[#allocation6 + $0xe8] sm:$0xff]
    %v222 = vld [vmem:[#allocation6 + $0xf0] sm:$0xff]
    %v223 = vld [vmem:[#allocation6 + $0xf8] sm:$0xff]
    %224 = vmatprep.subr.mxu0 0.0
    %225 = vmatpush1.msra.mxu0 %v192
    %226 = vmatprep.subr.mxu0 0.0
    %227 = vmatpush1.msra.mxu0 %v193
    %228 = vmatprep.subr.mxu0 0.0
    %229 = vmatpush1.msra.mxu0 %v194
    %230 = vmatprep.subr.mxu0 0.0
    %231 = vmatpush1.msra.mxu0 %v195
    %232 = vmatprep.subr.mxu0 0.0
    %233 = vmatpush1.msra.mxu0 %v196
    %234 = vmatprep.subr.mxu0 0.0
    %235 = vmatpush1.msra.mxu0 %v197
    %236 = vmatprep.subr.mxu0 0.0
    %237 = vmatpush1.msra.mxu0 %v198
    %238 = vmatprep.subr.mxu0 0.0
    %239 = vmatpush1.msra.mxu0 %v199
    %240 = vmatprep.subr.mxu0 0.0
    %241 = vmatpush1.msra.mxu0 %v200
    %242 = vmatprep.subr.mxu0 0.0
    %243 = vmatpush1.msra.mxu0 %v201
    %244 = vmatprep.subr.mxu0 0.0
    %245 = vmatpush1.msra.mxu0 %v202
    %246 = vmatprep.subr.mxu0 0.0
    %247 = vmatpush1.msra.mxu0 %v203
    %248 = vmatprep.subr.mxu0 0.0
    %249 = vmatpush1.msra.mxu0 %v204
    %250 = vmatprep.subr.mxu0 0.0
    %251 = vmatpush1.msra.mxu0 %v205
    %252 = vmatprep.subr.mxu0 0.0
    %253 = vmatpush1.msra.mxu0 %v206
    %254 = vmatprep.subr.mxu0 0.0
    %255 = vmatpush1.msra.mxu0 %v207
    %256 = vmatprep.subr.mxu0 0.0
    %257 = vmatpush1.msra.mxu0 %v208
    %258 = vmatprep.subr.mxu0 0.0
    %259 = vmatpush1.msra.mxu0 %v209
    %260 = vmatprep.subr.mxu0 0.0
    %261 = vmatpush1.msra.mxu0 %v210
    %262 = vmatprep.subr.mxu0 0.0
    %263 = vmatpush1.msra.mxu0 %v211
    %264 = vmatprep.subr.mxu0 0.0
    %265 = vmatpush1.msra.mxu0 %v212
    %266 = vmatprep.subr.mxu0 0.0
    %267 = vmatpush1.msra.mxu0 %v213
    %268 = vmatprep.subr.mxu0 0.0
    %269 = vmatpush1.msra.mxu0 %v214
    %270 = vmatprep.subr.mxu0 0.0
    %271 = vmatpush1.msra.mxu0 %v215
    %272 = vmatprep.subr.mxu0 0.0
    %273 = vmatpush1.msra.mxu0 %v216
    %274 = vmatprep.subr.mxu0 0.0
    %275 = vmatpush1.msra.mxu0 %v217
    %276 = vmatprep.subr.mxu0 0.0
    %277 = vmatpush1.msra.mxu0 %v218
    %278 = vmatprep.subr.mxu0 0.0
    %279 = vmatpush1.msra.mxu0 %v219
    %280 = vmatprep.subr.mxu0 0.0
    %281 = vmatpush1.msra.mxu0 %v220
    %282 = vmatprep.subr.mxu0 0.0
    %283 = vmatpush1.msra.mxu0 %v221
    %284 = vmatprep.subr.mxu0 0.0
    %285 = vmatpush1.msra.mxu0 %v222
    %286 = vmatprep.subr.mxu0 0.0
    %287 = vmatpush1.msra.mxu0 %v223
    %288 = vmatprep.mubr.f32.mxu0 %v189
    %289 = vmatmul.mubr.f32.gmra.mrb[0].mxu0 %v188
    %v290 = vpop.f32.mrb[0].mxu0
    %v291 = vadd.f32 0.0, %v290
    %v292 = vpop.f32.mrb[0].mxu0
    %293 = vmatprep.mubr.f32.mxu0 %v191
    %294 = vmatmul.mubr.f32.gmra.mrb[0].mxu0 %v190
    %v295 = vpop.f32.mrb[0].mxu0
    %v296 = vadd.f32 0.0, %v295
    %v297 = vpop.f32.mrb[0].mxu0
    %298 = vdwg.mxu0
    %p299 = scmp.eq.s32.totalorder 0, 0
    // Predicated region
    $region30: #{_mlp_call.1} parent=1 // pred_check
      %p300 = pneg %p299
    $region31: #{_mlp_call.1} parent=1 // pred_check_branch
      %302 = sbr.rel (%p300) target = $region33
    $region32: #{_mlp_call.1} parent=1 // pred_region
      %303 = vst [vmem:[#allocation2] sm:$0xff] %v291
      %304 = vst [vmem:[#allocation2 + $0x8] sm:$0xff] %v296
    $region33: #{_mlp_call.1} parent=1 // pred_fallthru
      _
    %p305 = scmp.gt.s32.totalorder 0, 0
    // Predicated region
    $region34: #{_mlp_call.1} parent=1 // pred_check
      %p306 = pneg %p305
    $region35: #{_mlp_call.1} parent=1 // pred_check_branch
      %308 = sbr.rel (%p306) target = $region37
    $region36: #{_mlp_call.1} parent=1 // pred_region
      %v309 = vld [vmem:[#allocation2] sm:$0xff]
      %v310 = vld [vmem:[#allocation2 + $0x8] sm:$0xff]
      %v311 = vadd.f32 %v309, %v291
      %v312 = vadd.f32 %v310, %v296
      %313 = vst [vmem:[#allocation2] sm:$0xff] %v311
      %314 = vst [vmem:[#allocation2 + $0x8] sm:$0xff] %v312
    $region37: #{_mlp_call.1} parent=1 // pred_fallthru
      _
    // Predicated region
    $region38: #{_mlp_call.1} parent=1 // pred_check
      %p315 = pneg %p299
    $region39: #{_mlp_call.1} parent=1 // pred_check_branch
      %317 = sbr.rel (%p315) target = $region41
    $region40: #{_mlp_call.1} parent=1 // pred_region
      %v318 = vld [vmem:[#allocation2] sm:$0xff]
      %v319 = vld [vmem:[#allocation2 + $0x8] sm:$0xff]
      %v320 = vld [vmem:[%s4] sm:$0x1]
      %v322 = vlaneseq
      %v323 = vshrl.u32 %v322, 7
      %v324 = vsub.s32 0, %v323
      %v325 = vrot.slane %v320, %v324
      %v327 = vadd.f32 %v318, %v325
      %v328 = vadd.f32 %v319, %v325
      %329 = vst [vmem:[#allocation8] sm:$0xff] %v327
      %330 = vst [vmem:[#allocation8 + $0x8] sm:$0xff] %v328
    $region41: #{_mlp_call.1} parent=1 // pred_fallthru
      _
    // Predicated region
    $region42: #{_mlp_call.1} parent=1 // pred_check
      _
    $region43: #{_mlp_call.1} parent=1 // pred_check_branch
      %332 = sbr.rel (0) target = $region45
    $region44: #{_mlp_call.1} parent=1 // pred_region
      %s334 = ssub.s32 256, 256
      %335 = vsyncadd [#allocation5], %s334
      %s336 = sshll.u32 [#allocation8], 4
      %s337 = int_to_ptr.vmem [resolvable:$true] %s336
      %342 = dma.vmem_to_hbm [thread:$0]  %s337, 256, %s5, [#allocation5], 128, 128, 8
    $region45: #{_mlp_call.1} parent=1 // pred_fallthru
      _
    // Predicated region
    $region46: #{_mlp_call.1} parent=1 // pred_check
      _
    $region47: #{_mlp_call.1} parent=1 // pred_check_branch
      %344 = sbr.rel (0) target = $region49
    $region48: #{_mlp_call.1} parent=1 // pred_region
      %345 = dma.done [#allocation5], 256
    $region49: #{_mlp_call.1} parent=1 // pred_fallthru
      _
    %346 = vsyncpa [#allocation4], 1
    %347 = vsyncpa [#allocation7], 1
    %348 = vsyncpa [#allocation5], 1

</llo_original>
